<compile_context>
chip_gen: v7x
topology: tpu7x:2x2x1
jax: 0.10.0
libtpu: 0.0.40
codegen_flags: <defaults>
</compile_context>

<pallas_src>
import math

import jax
import jax.numpy as jnp
import numpy as np
from jax.experimental import pallas as pl
from jax.experimental.pallas import tpu as pltpu


# ----------------------------------------------------------------------------
# Host-side glue: build per-cutout separable resampling matrices (numpy).
# ----------------------------------------------------------------------------
def _sinc(x):
    return np.where(x != 0, np.sin(np.pi * x) / (np.pi * x), 1.0)


def _lanczos(x, a):
    cond = np.logical_and(-a < x, x < a)
    out = np.where(cond, _sinc(x) * _sinc(x / a), 0.0)
    return out / out.sum()


def _ramp(ratio, width):
    n = math.ceil(width / ratio + 1)
    out = np.empty([n], dtype=np.float64)
    cur = 0.0
    for i in range(n):
        out[i] = cur
        cur += ratio
    return np.concatenate([-out[1:][::-1], out])[1:-1]


def _lanczos_conv_matrix(size, dst):
    """(size, size) matrix == reflect-pad + 1D lanczos conv (as in resample)."""
    kernel = _lanczos(_ramp(dst / size, 2), 2)
    kh = kernel.shape[0]
    pad = (kh - 1) // 2
    M = np.zeros((size, size), dtype=np.float64)
    for i in range(size):
        for t in range(kh):
            p = i + t - pad
            if p < 0:
                p = -p
            elif p >= size:
                p = 2 * size - 2 - p
            M[i, p] += kernel[t]
    return M


def _bicubic_matrix(in_size, out_size, A=-0.75):
    """(out_size, in_size) matrix == bicubic interp, align_corners=True."""
    def cc1(u):  # |u| <= 1
        return ((A + 2) * u - (A + 3)) * u * u + 1

    def cc2(u):  # 1 < |u| < 2
        return ((A * u - 5 * A) * u + 8 * A) * u - 4 * A

    M = np.zeros((out_size, in_size), dtype=np.float64)
    scale = (in_size - 1) / (out_size - 1) if out_size > 1 else 0.0
    for i in range(out_size):
        x = i * scale
        x0 = int(math.floor(x))
        t = x - x0
        coeffs = (cc2(t + 1), cc1(t), cc1(1 - t), cc2(2 - t))
        for k in range(4):
            idx = min(max(x0 - 1 + k, 0), in_size - 1)
            M[i, idx] += coeffs[k]
    return M


def _cutout_axis_weight(full, size, offset, cut):
    """(cut, full) matrix: crop [offset:offset+size] -> lanczos AA -> bicubic."""
    M = _bicubic_matrix(size, cut)
    if cut < size:  # resample only anti-aliases when downsampling
        M = M @ _lanczos_conv_matrix(size, cut)
    W = np.zeros((cut, full), dtype=np.float64)
    W[:, offset:offset + size] = M
    return W.astype(np.float32)


def _sample_cutout_weights(key, shape, cut_size, cutn, cut_pow):
    """Sample all cutout geometries with ONE device RNG call (one host sync)."""
    _, _, sideY, sideX = shape
    max_size = min(sideX, sideY)
    min_size = min(sideX, sideY, cut_size)
    u = np.asarray(jax.random.uniform(key, (cutn, 3)))          # single sync
    sizes = (u[:, 0] ** cut_pow * (max_size - min_size) + min_size).astype(np.int64)
    offx = np.floor(u[:, 1] * (sideX - sizes + 1)).astype(np.int64)
    offy = np.floor(u[:, 2] * (sideY - sizes + 1)).astype(np.int64)
    wy = np.stack([_cutout_axis_weight(sideY, int(sizes[n]), int(offy[n]), cut_size)
                   for n in range(cutn)])                        # (cutn, cs, sideY)
    wx = np.stack([_cutout_axis_weight(sideX, int(sizes[n]), int(offx[n]), cut_size)
                   for n in range(cutn)])                        # (cutn, cs, sideX)
    return wy, wx


# ----------------------------------------------------------------------------
# Pallas kernel: one grid step = one batch image, ALL cutouts at once.
#   wy_ref   : (cutn*cs, H)        all cutouts' Y weights, stacked
#   wxbd_ref : (cutn, C*W, C*cs)   per-cutout X weights^T, block-diag over C
#   x_ref    : (1, H, C*W)         image, pre-transposed so H is the contraction
#   o_ref    : (1, cutn, cs, C*cs)
# ----------------------------------------------------------------------------
def _cutouts_kernel(wy_ref, wxbd_ref, x_ref, o_ref):
    img = x_ref[0].astype(jnp.float32)                       # (H, C*W)
    wy = wy_ref[...].astype(jnp.float32)                     # (cutn*cs, H)
    # Step A: one big MXU matmul over H (lane dim of wy / sublane dim of img).
    s = jnp.dot(wy, img, preferred_element_type=jnp.float32)  # (cutn*cs, C*W)
    cutn, cw, ccs = wxbd_ref.shape
    cs = s.shape[0] // cutn
    s3 = s.reshape(cutn, cs, cw)                              # sublane-only split
    # Step B: batched MXU matmul over W (folded with C via block-diag weights).
    out = jnp.einsum("nyk,nkj->nyj", s3, wxbd_ref[...].astype(jnp.float32),
                     preferred_element_type=jnp.float32)      # (cutn, cs, C*cs)
    # clamp_with_grad forward pass == clamp(0, 1)
    o_ref[0] = jnp.clip(out, 0.0, 1.0).astype(o_ref.dtype)


def make_cutouts_pallas(x, wy_all, wxT_bd, cut_size):
    """x: (B, C, H, W); wy_all: (cutn*cs, H); wxT_bd: (cutn, C*W, C*cs)."""
    B, C, H, W = x.shape
    cs = cut_size
    cutn = wxT_bd.shape[0]
    # Present the image to the kernel as (H, C*W) so both contractions are
    # canonical matmuls (no in-kernel transposes).  One XLA transpose per call.
    x_t = jnp.transpose(x, (0, 2, 1, 3)).reshape(B, H, C * W)

    flops = 2 * B * cutn * cs * C * W * (H + C * cs)
    bytes_accessed = int(x.size * x.dtype.itemsize
                         + (wy_all.size + wxT_bd.size) * 4
                         + B * cutn * cs * C * cs * x.dtype.itemsize)

    out = pl.pallas_call(
        _cutouts_kernel,
        out_shape=jax.ShapeDtypeStruct((B, cutn, cs, C * cs), x.dtype),
        grid_spec=pltpu.PrefetchScalarGridSpec(
            num_scalar_prefetch=0,
            grid=(B,),
            in_specs=[
                # Weights: constant block index -> DMA'd once, held resident.
                pl.BlockSpec((cutn * cs, H), lambda b: (0, 0)),
                pl.BlockSpec((cutn, C * W, C * cs), lambda b: (0, 0, 0)),
                # Image: fetched exactly once per batch element.
                pl.BlockSpec((1, H, C * W), lambda b: (b, 0, 0)),
            ],
            out_specs=pl.BlockSpec((1, cutn, cs, C * cs),
                                   lambda b: (b, 0, 0, 0)),
        ),
        compiler_params=pltpu.CompilerParams(
            dimension_semantics=("parallel",)),  # v7x: shard batch over 2 TCs
        cost_estimate=pl.CostEstimate(flops=flops, transcendentals=0,
                                      bytes_accessed=bytes_accessed),
    )(wy_all, wxT_bd, x_t)

    # out[b, n, y, c*cs + j] -> (cutn*B, C, cs, cs), matching torch.cat(dim=0).
    out = out.reshape(B, cutn, cs, C, cs)
    out = jnp.transpose(out, (1, 0, 3, 2, 4))   # (cutn, B, C, cs, cs)
    return out.reshape(cutn * B, C, cs, cs)


# ----------------------------------------------------------------------------
# MakeCutouts wrapper (forward, grads=True clamp, augs disabled — see TODOs).
# ----------------------------------------------------------------------------
def make_cutouts_forward(x, key, cut_size, cutn, cut_pow=1.0):
    B, C, sideY, sideX = x.shape
    wy, wx = _sample_cutout_weights(key, x.shape, cut_size, cutn, cut_pow)
    wy_all = jnp.asarray(wy.reshape(cutn * cut_size, sideY))          # (cutn*cs, H)
    eye_c = np.eye(C, dtype=np.float32)
    wxT_bd = jnp.asarray(np.stack([np.kron(eye_c, w.T) for w in wx])) # (cutn, C*W, C*cs)
    return make_cutouts_pallas(x, wy_all, wxT_bd, cut_size)


if __name__ == "__main__":
    B, C, H, W = 2, 3, 32, 32
    cut_size, cutn, cut_pow = 16, 4, 1.0

    key = jax.random.PRNGKey(0)
    key, k_img, k_cut = jax.random.split(key, 3)
    x = jax.random.uniform(k_img, (B, C, H, W), dtype=jnp.float32)

    out = make_cutouts_forward(x, k_cut, cut_size, cutn, cut_pow)
    out = jax.block_until_ready(out)

    assert out.shape == (cutn * B, C, cut_size, cut_size), out.shape
    assert out.dtype == jnp.float32
    assert bool(jnp.all(jnp.isfinite(out)))
    assert float(out.min()) >= 0.0 and float(out.max()) <= 1.0

    # Pure-JAX reference of the same separable operator (same sampled weights).
    wy_ref, wx_ref = _sample_cutout_weights(k_cut, x.shape, cut_size, cutn, cut_pow)
    ref = jnp.einsum("nyh,bchw,njw->nbcyj",
                     jnp.asarray(wy_ref), x, jnp.asarray(wx_ref))
    ref = jnp.clip(ref, 0.0, 1.0).reshape(cutn * B, C, cut_size, cut_size)
    assert bool(jnp.max(jnp.abs(out - ref)) < 2e-3), float(jnp.max(jnp.abs(out - ref)))

    print("KERNEL_OK")
</pallas_src>

<mosaic_0001>
module attributes {stable_mosaic.version = 11 : i64} {
  func.func @_cutouts_kernel(%arg0: i32, %arg1: memref<64x32xf32, #tpu.memory_space<vmem>>, %arg2: memref<4x96x48xf32, #tpu.memory_space<vmem>>, %arg3: memref<1x32x96xf32, #tpu.memory_space<vmem>>, %arg4: memref<1x4x16x48xf32, #tpu.memory_space<vmem>>) attributes {dimension_semantics = [#tpu.dimension_semantics<parallel>], iteration_bounds = array<i64: 2>, scalar_prefetch = 0 : i64, scratch_operands = 0 : i64, tpu.core_type = #tpu.core_type<tc>, window_params = [{pipeline_mode = #tpu.pipeline_mode<synchronous>, transform_indices = @transform_0, window_bounds = array<i64: 64, 32>}, {pipeline_mode = #tpu.pipeline_mode<synchronous>, transform_indices = @transform_1, window_bounds = array<i64: 4, 96, 48>}, {transform_indices = @transform_2, window_bounds = array<i64: 1, 32, 96>}, {transform_indices = @transform_3, window_bounds = array<i64: 1, 4, 16, 48>}]} {
    %c0 = arith.constant 0 : index
    %c0_0 = arith.constant 0 : index
    %c0_1 = arith.constant 0 : index
    %0 = vector.load %arg3[%c0, %c0_0, %c0_1] : memref<1x32x96xf32, #tpu.memory_space<vmem>>, vector<1x32x96xf32>
    %1 = vector.shape_cast %0 : vector<1x32x96xf32> to vector<32x96xf32>
    %c0_2 = arith.constant 0 : index
    %c0_3 = arith.constant 0 : index
    %2 = vector.load %arg1[%c0_2, %c0_3] : memref<64x32xf32, #tpu.memory_space<vmem>>, vector<64x32xf32>
    %cst = arith.constant dense<0.000000e+00> : vector<64x96xf32>
    %3 = tpu.matmul %2, %1, %cst {dimension_numbers = #tpu.dot_dimension_numbers<[1], [0], [0], [1], [0, 0, 1, 1], [], []>} : vector<64x32xf32>, vector<32x96xf32>, vector<64x96xf32> -> vector<64x96xf32>
    %4 = vector.shape_cast %3 : vector<64x96xf32> to vector<4x16x96xf32>
    %c0_4 = arith.constant 0 : index
    %c0_5 = arith.constant 0 : index
    %c0_6 = arith.constant 0 : index
    %5 = vector.load %arg2[%c0_4, %c0_5, %c0_6] : memref<4x96x48xf32, #tpu.memory_space<vmem>>, vector<4x96x48xf32>
    "tpu.trace_start"() <{level = 10 : i32, message = "nyk,nkj->nyj"}> : () -> ()
    %cst_7 = arith.constant dense<0.000000e+00> : vector<4x16x48xf32>
    %6 = tpu.matmul %4, %5, %cst_7 {dimension_numbers = #tpu.dot_dimension_numbers<[2], [1], [1], [2], [0, 0, 0, 1, 1, 2], [0], [0]>} : vector<4x16x96xf32>, vector<4x96x48xf32>, vector<4x16x48xf32> -> vector<4x16x48xf32>
    %cst_8 = arith.constant 0.000000e+00 : f32
    %cst_9 = arith.constant 1.000000e+00 : f32
    "tpu.trace_stop"() : () -> ()
    %7 = vector.broadcast %cst_8 : f32 to vector<4x16x48xf32>
    %8 = arith.maximumf %7, %6 : vector<4x16x48xf32>
    %9 = vector.broadcast %cst_9 : f32 to vector<4x16x48xf32>
    %10 = arith.minimumf %9, %8 : vector<4x16x48xf32>
    %c0_10 = arith.constant 0 : index
    %c0_11 = arith.constant 0 : index
    %c0_12 = arith.constant 0 : index
    %c0_13 = arith.constant 0 : index
    %11 = vector.load %arg4[%c0_10, %c0_11, %c0_12, %c0_13] : memref<1x4x16x48xf32, #tpu.memory_space<vmem>>, vector<1x4x16x48xf32>
    %12 = vector.shape_cast %11 : vector<1x4x16x48xf32> to vector<4x16x48xf32>
    %13 = vector.shape_cast %10 : vector<4x16x48xf32> to vector<1x4x16x48xf32>
    tpu.vector_store %arg4[%c0_10, %c0_11, %c0_12, %c0_13], %13 {strides = array<i32>} : memref<1x4x16x48xf32, #tpu.memory_space<vmem>>, vector<1x4x16x48xf32>,
    return
  }
  func.func @transform_0(%arg0: i32) -> (i32, i32) {
    %c0_i32 = arith.constant 0 : i32
    %c0_i32_0 = arith.constant 0 : i32
    %c0_i32_1 = arith.constant 0 : i32
    return %c0_i32, %c0_i32_0 : i32, i32
  }
  func.func @transform_1(%arg0: i32) -> (i32, i32, i32) {
    %c0_i32 = arith.constant 0 : i32
    %c0_i32_0 = arith.constant 0 : i32
    %c0_i32_1 = arith.constant 0 : i32
    %c0_i32_2 = arith.constant 0 : i32
    return %c0_i32, %c0_i32_0, %c0_i32_1 : i32, i32, i32
  }
  func.func @transform_2(%arg0: i32) -> (i32, i32, i32) {
    %c0_i32 = arith.constant 0 : i32
    %c0_i32_0 = arith.constant 0 : i32
    %c0_i32_1 = arith.constant 0 : i32
    return %arg0, %c0_i32, %c0_i32_0 : i32, i32, i32
  }
  func.func @transform_3(%arg0: i32) -> (i32, i32, i32, i32) {
    %c0_i32 = arith.constant 0 : i32
    %c0_i32_0 = arith.constant 0 : i32
    %c0_i32_1 = arith.constant 0 : i32
    %c0_i32_2 = arith.constant 0 : i32
    return %arg0, %c0_i32, %c0_i32_0, %c0_i32_1 : i32, i32, i32, i32
  }
}

</mosaic_0001>

<llo_original>
// kernel: tpu_custom_call.1
$region0: #{tpu_custom_call.1}
  #allocation0 [shape = 'u32[]', space=smem, size = 0x4, offset = 0x4, fixed_abs, tag = 'smem constant byte address 0x4 - core index']
  #allocation1 [shape = 'u32[144,128]{1,0:T(1,128)}', space=vmem, size = 0x12000, scoped, tag = 'internal scratch']
  %s0 = inlined_call_operand.vmem [shape: f32[64,32], index: 0, kind: input, shape index: {}]
  %s1 = inlined_call_operand.vmem [shape: f32[4,96,48], index: 1, kind: input, shape index: {}]
  %s2 = inlined_call_operand.vmem [shape: f32[2,32,96], index: 2, kind: input, shape index: {}]
  %s3 = inlined_call_operand.hbm [shape: f32[2,4,16,48], index: 3, kind: output, shape index: {}]
  %s4 = sld [smem:[#allocation0]]
  $region45: #{tpu_custom_call.1} parent=0
    _
  %s6 = ssub.s32 1, %s4
  %s7 = scalar_select 0, %s6, %s4
  $region1: #{tpu_custom_call.1} parent=0
    #allocation2 [shape = 'u8[65536]{0}', space=vmem, size = 0x10000, scoped, tag = 'output window, operand 0']
    #allocation3 [shape = 's32[2]{0}', space=sflag, size = 0x8, scoped, tag = 'scoped memory for tpu_custom_call.1']
    %8 = vsyncpa [#allocation3], 0
    %s9 = scalar_lea.sflag [#allocation3], 1
    %10 = vsyncpa %s9, 0
    loop: start=0, step=1, limit=4
    $region2: #{tpu_custom_call.1} parent=1 // loop_pre_header
      _
    $region3: #{tpu_custom_call.1} parent=1 // loop_header
      %s12 = sphi 0, %s16
      %p13 = scmp.ge.s32.totalorder %s12, 4
      %s20 = sphi 0, %s20
      %s22 = sphi 0, %s20
      %s23 = sphi 0, %s22
      %s37 = sphi 0, %s23
      %s41 = sphi 0, %s41
      %s43 = sphi 0, %s41
      %s44 = sphi 0, %s43
      %s58 = sphi 0, %s44
      %s64 = sphi 0, %s66
      %s67 = sphi 0, %s64
      %s68 = sphi 0, %s67
      %s84 = sphi 0, %s68
      %s90 = sphi 0, %s92
      %s93 = sphi 0, %s90
      %s94 = sphi 0, %s93
      %s110 = sphi 0, %s94
    $region4: #{tpu_custom_call.1} parent=1 // loop_header_branch
      %15 = sbr.rel (%p13) target = $region8
    $region5: #{tpu_custom_call.1} parent=1 // loop_body
      %s17 = ssub.s32 %s12, 1
      %s18 = ssub.s32 %s12, 2
      %s19 = sadd.s32 %s12, 1
      %s21 = sadd.s32 %s20, 1
      %p24 = scmp.eq.s32.totalorder %s12, 1
      %p25 = scmp.ne.s32.totalorder %s20, %s22
      %p26 = scmp.eq.s32.totalorder %s12, 0
      %p27 = por %p25, %p26
      %p28 = scmp.ne.s32.totalorder %s20, %s22
      %p29 = scmp.eq.s32.totalorder %s17, 1
      %p30 = por %p28, %p29
      %p31 = scmp.ne.s32.totalorder %s22, %s23
      %p32 = scmp.eq.s32.totalorder %s17, 0
      %p33 = por %p31, %p32
      %p34 = scmp.ne.s32.totalorder %s22, %s23
      %p35 = scmp.eq.s32.totalorder %s18, 1
      %p36 = por %p34, %p35
      %p38 = scmp.ne.s32.totalorder %s23, %s37
      %p39 = scmp.eq.s32.totalorder %s18, 0
      %p40 = por %p38, %p39
      %s42 = sadd.s32 %s41, 1
      %p45 = scmp.eq.s32.totalorder %s12, 1
      %p46 = scmp.ne.s32.totalorder %s41, %s43
      %p47 = scmp.eq.s32.totalorder %s12, 0
      %p48 = por %p46, %p47
      %p49 = scmp.ne.s32.totalorder %s41, %s43
      %p50 = scmp.eq.s32.totalorder %s17, 1
      %p51 = por %p49, %p50
      %p52 = scmp.ne.s32.totalorder %s43, %s44
      %p53 = scmp.eq.s32.totalorder %s17, 0
      %p54 = por %p52, %p53
      %p55 = scmp.ne.s32.totalorder %s43, %s44
      %p56 = scmp.eq.s32.totalorder %s18, 1
      %p57 = por %p55, %p56
      %p59 = scmp.ne.s32.totalorder %s44, %s58
      %p60 = scmp.eq.s32.totalorder %s18, 0
      %p61 = por %p59, %p60
      %s62 = ssub.s32 %s12, %s19
      %p63 = scmp.eq.s32.totalorder %s62, 0
      %s65 = sadd.s32 %s64, 1
      %s66 = scalar_select %p63, %s64, %s65
      %p69 = pneg %p63
      %p70 = scmp.eq.s32.totalorder %s12, 1
      %p71 = por %p69, %p70
      %p72 = scmp.ne.s32.totalorder %s64, %s67
      %p73 = scmp.eq.s32.totalorder %s12, 0
      %p74 = por %p72, %p73
      %p75 = scmp.ne.s32.totalorder %s64, %s67
      %p76 = scmp.eq.s32.totalorder %s17, 1
      %p77 = por %p75, %p76
      %p78 = scmp.ne.s32.totalorder %s67, %s68
      %p79 = scmp.eq.s32.totalorder %s17, 0
      %p80 = por %p78, %p79
      %p81 = scmp.ne.s32.totalorder %s67, %s68
      %p82 = scmp.eq.s32.totalorder %s18, 1
      %p83 = por %p81, %p82
      %p85 = scmp.ne.s32.totalorder %s68, %s84
      %p86 = scmp.eq.s32.totalorder %s18, 0
      %p87 = por %p85, %p86
      %s88 = ssub.s32 %s12, %s19
      %p89 = scmp.eq.s32.totalorder %s88, 0
      %s91 = sadd.s32 %s90, 1
      %s92 = scalar_select %p89, %s90, %s91
      %p95 = pneg %p89
      %p96 = scmp.eq.s32.totalorder %s12, 1
      %p97 = por %p95, %p96
      %p98 = scmp.ne.s32.totalorder %s90, %s93
      %p99 = scmp.eq.s32.totalorder %s12, 0
      %p100 = por %p98, %p99
      %p101 = scmp.ne.s32.totalorder %s90, %s93
      %p102 = scmp.eq.s32.totalorder %s17, 1
      %p103 = por %p101, %p102
      %p104 = scmp.ne.s32.totalorder %s93, %s94
      %p105 = scmp.eq.s32.totalorder %s17, 0
      %p106 = por %p104, %p105
      %p107 = scmp.ne.s32.totalorder %s93, %s94
      %p108 = scmp.eq.s32.totalorder %s18, 1
      %p109 = por %p107, %p108
      %p111 = scmp.ne.s32.totalorder %s94, %s110
      %p112 = scmp.eq.s32.totalorder %s18, 0
      %p113 = por %p111, %p112
      %p114 = scmp.le.s32.totalorder 1, %s12
      %p115 = scmp.lt.s32.totalorder %s12, 3
      %p116 = pnand %p114, %p115
      %p117 = pneg %p116
      // Predicated region
      $region9: #{tpu_custom_call.1} parent=5 // pred_check
        _
      $region10: #{tpu_custom_call.1} parent=5 // pred_check_branch
        %119 = sbr.rel (%p116) target = $region12
      $region11: #{tpu_custom_call.1} parent=5 // pred_region
        %s120 = ssub.s32 %s12, 1
        // Predicated region
        $region13: #{tpu_custom_call.1} parent=11 // pred_check
          %p121 = pneg %p33
        $region14: #{tpu_custom_call.1} parent=11 // pred_check_branch
          %123 = sbr.rel (%p121) target = $region16
        $region15: #{tpu_custom_call.1} parent=11 // pred_region
          _
        $region16: #{tpu_custom_call.1} parent=11 // pred_fallthru
          _
        // Predicated region
        $region17: #{tpu_custom_call.1} parent=11 // pred_check
          %p124 = pneg %p54
        $region18: #{tpu_custom_call.1} parent=11 // pred_check_branch
          %126 = sbr.rel (%p124) target = $region20
        $region19: #{tpu_custom_call.1} parent=11 // pred_region
          _
        $region20: #{tpu_custom_call.1} parent=11 // pred_fallthru
          _
      $region12: #{tpu_custom_call.1} parent=5 // pred_fallthru
        _
      %p127 = scmp.lt.s32.totalorder %s12, 2
      // Predicated region
      $region21: #{tpu_custom_call.1} parent=5 // pred_check
        %p128 = pneg %p127
      $region22: #{tpu_custom_call.1} parent=5 // pred_check_branch
        %130 = sbr.rel (%p128) target = $region24
      $region23: #{tpu_custom_call.1} parent=5 // pred_region
        // Predicated region
        $region25: #{tpu_custom_call.1} parent=23 // pred_check
          %p131 = pneg %p74
        $region26: #{tpu_custom_call.1} parent=23 // pred_check_branch
          %133 = sbr.rel (%p131) target = $region28
        $region27: #{tpu_custom_call.1} parent=23 // pred_region
          %p134 = scmp.lt.s32.totalorder %s12, 1
          %s135 = scalar_select %p134, %s12, 1
          %s136 = smul.addr %s135, 4
          %s137 = smul.addr %s136, 8
          %s138 = scalar_lea.vmem %s2, %s137
        $region28: #{tpu_custom_call.1} parent=23 // pred_fallthru
          _
      $region24: #{tpu_custom_call.1} parent=5 // pred_fallthru
        _
      %p139 = scmp.le.s32.totalorder 1, %s12
      %p140 = scmp.lt.s32.totalorder %s12, 3
      %p141 = pnand %p139, %p140
      %p142 = pneg %p141
      // Predicated region
      $region29: #{tpu_custom_call.1} parent=5 // pred_check
        _
      $region30: #{tpu_custom_call.1} parent=5 // pred_check_branch
        %144 = sbr.rel (%p141) target = $region32
      $region31: #{tpu_custom_call.1} parent=5 // pred_region
        %s145 = ssub.s32 %s12, 1
        %p146 = pneg %p33
        %p147 = pneg %p30
        %p148 = pneg %p54
        %p149 = pneg %p51
        %p150 = scmp.lt.s32.totalorder %s17, 1
        %s151 = scalar_select %p150, %s17, 1
        %s152 = smul.addr %s151, 4
        %s153 = smul.addr %s152, 8
        %s154 = scalar_lea.vmem %s2, %s153
        %p155 = pneg %p80
        %p156 = pneg %p77
        %p157 = pneg %p106
        %p158 = pneg %p103
        %s159 = sand.u32 %s93, 1
        %s160 = scalar_lea.sflag [#allocation3], %s159
        %s161 = sand.u32 %s93, 1
        %s162 = smul.addr %s161, 64
        %s163 = scalar_lea.vmem [#allocation2], %s162
        %p164 = scmp.lt.s32.totalorder %s17, 1
        %s165 = scalar_select %p164, %s17, 1
        %s166 = smul.addr %s165, 4
        %s167 = smul.addr %s166, 8
        %s168 = scalar_lea.vmem %s2, %s167
        %v169 = vld [vmem:[%s168] sm:$0xff]
        %v170 = vld [vmem:[%s168 + $0x8] sm:$0xff]
        %v171 = vld [vmem:[%s168 + $0x10] sm:$0xff]
        %v172 = vld [vmem:[%s168 + $0x18] sm:$0xff]
        %v173 = vld [vmem:[%s0] sm:$0xff]
        %v174 = vld [vmem:[%s0 + $0x8] sm:$0xff]
        %v175 = vld [vmem:[%s0 + $0x10] sm:$0xff]
        %v176 = vld [vmem:[%s0 + $0x18] sm:$0xff]
        %v177 = vld [vmem:[%s0 + $0x20] sm:$0xff]
        %v178 = vld [vmem:[%s0 + $0x28] sm:$0xff]
        %v179 = vld [vmem:[%s0 + $0x30] sm:$0xff]
        %v180 = vld [vmem:[%s0 + $0x38] sm:$0xff]
        %vm181 = vcmask 261120
        %v183 = vsel %vm181, %v173, 0
        %v186 = vsel %vm181, %v174, 0
        %v189 = vsel %vm181, %v175, 0
        %v192 = vsel %vm181, %v176, 0
        %v195 = vsel %vm181, %v177, 0
        %v198 = vsel %vm181, %v178, 0
        %v201 = vsel %vm181, %v179, 0
        %v204 = vsel %vm181, %v180, 0
        %206 = vmatprep.subr.mxu0 0.0
        %207 = vmatpush1.msra.mxu0 %v169
        %208 = vmatprep.subr.mxu0 0.0
        %209 = vmatpush1.msra.mxu0 %v170
        %210 = vmatprep.subr.mxu0 0.0
        %211 = vmatpush1.msra.mxu0 %v171
        %212 = vmatprep.subr.mxu0 0.0
        %213 = vmatpush1.msra.mxu0 %v172
        %214 = vmatprep.subr.mxu0 0.0
        %215 = vmatpush1.msra.mxu0 0.0
        %216 = vmatprep.subr.mxu0 0.0
        %217 = vmatpush1.msra.mxu0 0.0
        %218 = vmatprep.subr.mxu0 0.0
        %219 = vmatpush1.msra.mxu0 0.0
        %220 = vmatprep.subr.mxu0 0.0
        %221 = vmatpush1.msra.mxu0 0.0
        %222 = vmatprep.subr.mxu0 0.0
        %223 = vmatpush1.msra.mxu0 0.0
        %224 = vmatprep.subr.mxu0 0.0
        %225 = vmatpush1.msra.mxu0 0.0
        %226 = vmatprep.subr.mxu0 0.0
        %227 = vmatpush1.msra.mxu0 0.0
        %228 = vmatprep.subr.mxu0 0.0
        %229 = vmatpush1.msra.mxu0 0.0
        %230 = vmatprep.subr.mxu0 0.0
        %231 = vmatpush1.msra.mxu0 0.0
        %232 = vmatprep.subr.mxu0 0.0
        %233 = vmatpush1.msra.mxu0 0.0
        %234 = vmatprep.subr.mxu0 0.0
        %235 = vmatpush1.msra.mxu0 0.0
        %236 = vmatprep.subr.mxu0 0.0
        %237 = vmatpush1.msra.mxu0 0.0
        %238 = vmatprep.subr.mxu0 0.0
        %239 = vmatpush1.msra.mxu0 0.0
        %240 = vmatprep.subr.mxu0 0.0
        %241 = vmatpush1.msra.mxu0 0.0
        %242 = vmatprep.subr.mxu0 0.0
        %243 = vmatpush1.msra.mxu0 0.0
        %244 = vmatprep.subr.mxu0 0.0
        %245 = vmatpush1.msra.mxu0 0.0
        %246 = vmatprep.subr.mxu0 0.0
        %247 = vmatpush1.msra.mxu0 0.0
        %248 = vmatprep.subr.mxu0 0.0
        %249 = vmatpush1.msra.mxu0 0.0
        %250 = vmatprep.subr.mxu0 0.0
        %251 = vmatpush1.msra.mxu0 0.0
        %252 = vmatprep.subr.mxu0 0.0
        %253 = vmatpush1.msra.mxu0 0.0
        %254 = vmatprep.subr.mxu0 0.0
        %255 = vmatpush1.msra.mxu0 0.0
        %256 = vmatprep.subr.mxu0 0.0
        %257 = vmatpush1.msra.mxu0 0.0
        %258 = vmatprep.subr.mxu0 0.0
        %259 = vmatpush1.msra.mxu0 0.0
        %260 = vmatprep.subr.mxu0 0.0
        %261 = vmatpush1.msra.mxu0 0.0
        %262 = vmatprep.subr.mxu0 0.0
        %263 = vmatpush1.msra.mxu0 0.0
        %264 = vmatprep.subr.mxu0 0.0
        %265 = vmatpush1.msra.mxu0 0.0
        %266 = vmatprep.subr.mxu0 0.0
        %267 = vmatpush1.msra.mxu0 0.0
        %268 = vmatprep.subr.mxu0 0.0
        %269 = vmatpush1.msra.mxu0 0.0
        %270 = vmatprep.mubr.f32.mxu0 0.0
        %271 = vmatmul.mubr.f32.gmra.mrb[0].mxu0 %v183
        %v272 = vpop.f32.mrb[0].mxu0
        %v273 = vadd.f32 0.0, %v272
        %v274 = vpop.f32.mrb[0].mxu0
        %275 = vmatprep.mubr.f32.mxu0 0.0
        %276 = vmatmul.mubr.f32.gmra.mrb[0].mxu0 %v186
        %v277 = vpop.f32.mrb[0].mxu0
        %v278 = vadd.f32 0.0, %v277
        %v279 = vpop.f32.mrb[0].mxu0
        %280 = vmatprep.mubr.f32.mxu0 0.0
        %281 = vmatmul.mubr.f32.gmra.mrb[0].mxu0 %v189
        %v282 = vpop.f32.mrb[0].mxu0
        %v283 = vadd.f32 0.0, %v282
        %v284 = vpop.f32.mrb[0].mxu0
        %285 = vmatprep.mubr.f32.mxu0 0.0
        %286 = vmatmul.mubr.f32.gmra.mrb[0].mxu0 %v192
        %v287 = vpop.f32.mrb[0].mxu0
        %v288 = vadd.f32 0.0, %v287
        %v289 = vpop.f32.mrb[0].mxu0
        %290 = vmatprep.mubr.f32.mxu0 0.0
        %291 = vmatmul.mubr.f32.gmra.mrb[0].mxu0 %v195
        %v292 = vpop.f32.mrb[0].mxu0
        %v293 = vadd.f32 0.0, %v292
        %v294 = vpop.f32.mrb[0].mxu0
        %295 = vmatprep.mubr.f32.mxu0 0.0
        %296 = vmatmul.mubr.f32.gmra.mrb[0].mxu0 %v198
        %v297 = vpop.f32.mrb[0].mxu0
        %v298 = vadd.f32 0.0, %v297
        %v299 = vpop.f32.mrb[0].mxu0
        %300 = vmatprep.mubr.f32.mxu0 0.0
        %301 = vmatmul.mubr.f32.gmra.mrb[0].mxu0 %v201
        %v302 = vpop.f32.mrb[0].mxu0
        %v303 = vadd.f32 0.0, %v302
        %v304 = vpop.f32.mrb[0].mxu0
        %305 = vmatprep.mubr.f32.mxu0 0.0
        %306 = vmatmul.mubr.f32.gmra.mrb[0].mxu0 %v204
        %v307 = vpop.f32.mrb[0].mxu0
        %v308 = vadd.f32 0.0, %v307
        %v309 = vpop.f32.mrb[0].mxu0
        %310 = vdwg.mxu0
        %v311 = vld [vmem:[%s1] sm:$0xff]
        %v312 = vld [vmem:[%s1 + $0x8] sm:$0xff]
        %v313 = vld [vmem:[%s1 + $0x10] sm:$0xff]
        %v314 = vld [vmem:[%s1 + $0x18] sm:$0xff]
        %v315 = vld [vmem:[%s1 + $0x20] sm:$0xff]
        %v316 = vld [vmem:[%s1 + $0x28] sm:$0xff]
        %v317 = vld [vmem:[%s1 + $0x30] sm:$0xff]
        %v318 = vld [vmem:[%s1 + $0x38] sm:$0xff]
        %v319 = vld [vmem:[%s1 + $0x40] sm:$0xff]
        %v320 = vld [vmem:[%s1 + $0x48] sm:$0xff]
        %v321 = vld [vmem:[%s1 + $0x50] sm:$0xff]
        %v322 = vld [vmem:[%s1 + $0x58] sm:$0xff]
        %v323 = vld [vmem:[%s1 + $0x60] sm:$0xff]
        %v324 = vld [vmem:[%s1 + $0x68] sm:$0xff]
        %v325 = vld [vmem:[%s1 + $0x70] sm:$0xff]
        %v326 = vld [vmem:[%s1 + $0x78] sm:$0xff]
        %v327 = vld [vmem:[%s1 + $0x80] sm:$0xff]
        %v328 = vld [vmem:[%s1 + $0x88] sm:$0xff]
        %v329 = vld [vmem:[%s1 + $0x90] sm:$0xff]
        %v330 = vld [vmem:[%s1 + $0x98] sm:$0xff]
        %v331 = vld [vmem:[%s1 + $0xa0] sm:$0xff]
        %v332 = vld [vmem:[%s1 + $0xa8] sm:$0xff]
        %v333 = vld [vmem:[%s1 + $0xb0] sm:$0xff]
        %v334 = vld [vmem:[%s1 + $0xb8] sm:$0xff]
        %v335 = vld [vmem:[%s1 + $0xc0] sm:$0xff]
        %v336 = vld [vmem:[%s1 + $0xc8] sm:$0xff]
        %v337 = vld [vmem:[%s1 + $0xd0] sm:$0xff]
        %v338 = vld [vmem:[%s1 + $0xd8] sm:$0xff]
        %v339 = vld [vmem:[%s1 + $0xe0] sm:$0xff]
        %v340 = vld [vmem:[%s1 + $0xe8] sm:$0xff]
        %v341 = vld [vmem:[%s1 + $0xf0] sm:$0xff]
        %v342 = vld [vmem:[%s1 + $0xf8] sm:$0xff]
        %v343 = vld [vmem:[%s1 + $0x100] sm:$0xff]
        %v344 = vld [vmem:[%s1 + $0x108] sm:$0xff]
        %v345 = vld [vmem:[%s1 + $0x110] sm:$0xff]
        %v346 = vld [vmem:[%s1 + $0x118] sm:$0xff]
        %v347 = vld [vmem:[%s1 + $0x120] sm:$0xff]
        %v348 = vld [vmem:[%s1 + $0x128] sm:$0xff]
        %v349 = vld [vmem:[%s1 + $0x130] sm:$0xff]
        %v350 = vld [vmem:[%s1 + $0x138] sm:$0xff]
        %v351 = vld [vmem:[%s1 + $0x140] sm:$0xff]
        %v352 = vld [vmem:[%s1 + $0x148] sm:$0xff]
        %v353 = vld [vmem:[%s1 + $0x150] sm:$0xff]
        %v354 = vld [vmem:[%s1 + $0x158] sm:$0xff]
        %v355 = vld [vmem:[%s1 + $0x160] sm:$0xff]
        %v356 = vld [vmem:[%s1 + $0x168] sm:$0xff]
        %v357 = vld [vmem:[%s1 + $0x170] sm:$0xff]
        %v358 = vld [vmem:[%s1 + $0x178] sm:$0xff]
        %vm359 = vcmask 785408
        %v361 = vsel %vm359, %v273, 0
        %v364 = vsel %vm359, %v278, 0
        %366 = vmatprep.subr.mxu0 0.0
        %367 = vmatpush1.msra.mxu0 %v311
        %368 = vmatprep.subr.mxu0 0.0
        %369 = vmatpush1.msra.mxu0 %v312
        %370 = vmatprep.subr.mxu0 0.0
        %371 = vmatpush1.msra.mxu0 %v313
        %372 = vmatprep.subr.mxu0 0.0
        %373 = vmatpush1.msra.mxu0 %v314
        %374 = vmatprep.subr.mxu0 0.0
        %375 = vmatpush1.msra.mxu0 %v315
        %376 = vmatprep.subr.mxu0 0.0
        %377 = vmatpush1.msra.mxu0 %v316
        %378 = vmatprep.subr.mxu0 0.0
        %379 = vmatpush1.msra.mxu0 %v317
        %380 = vmatprep.subr.mxu0 0.0
        %381 = vmatpush1.msra.mxu0 %v318
        %382 = vmatprep.subr.mxu0 0.0
        %383 = vmatpush1.msra.mxu0 %v319
        %384 = vmatprep.subr.mxu0 0.0
        %385 = vmatpush1.msra.mxu0 %v320
        %386 = vmatprep.subr.mxu0 0.0
        %387 = vmatpush1.msra.mxu0 %v321
        %388 = vmatprep.subr.mxu0 0.0
        %389 = vmatpush1.msra.mxu0 %v322
        %390 = vmatprep.subr.mxu0 0.0
        %391 = vmatpush1.msra.mxu0 0.0
        %392 = vmatprep.subr.mxu0 0.0
        %393 = vmatpush1.msra.mxu0 0.0
        %394 = vmatprep.subr.mxu0 0.0
        %395 = vmatpush1.msra.mxu0 0.0
        %396 = vmatprep.subr.mxu0 0.0
        %397 = vmatpush1.msra.mxu0 0.0
        %398 = vmatprep.subr.mxu0 0.0
        %399 = vmatpush1.msra.mxu0 0.0
        %400 = vmatprep.subr.mxu0 0.0
        %401 = vmatpush1.msra.mxu0 0.0
        %402 = vmatprep.subr.mxu0 0.0
        %403 = vmatpush1.msra.mxu0 0.0
        %404 = vmatprep.subr.mxu0 0.0
        %405 = vmatpush1.msra.mxu0 0.0
        %406 = vmatprep.subr.mxu0 0.0
        %407 = vmatpush1.msra.mxu0 0.0
        %408 = vmatprep.subr.mxu0 0.0
        %409 = vmatpush1.msra.mxu0 0.0
        %410 = vmatprep.subr.mxu0 0.0
        %411 = vmatpush1.msra.mxu0 0.0
        %412 = vmatprep.subr.mxu0 0.0
        %413 = vmatpush1.msra.mxu0 0.0
        %414 = vmatprep.subr.mxu0 0.0
        %415 = vmatpush1.msra.mxu0 0.0
        %416 = vmatprep.subr.mxu0 0.0
        %417 = vmatpush1.msra.mxu0 0.0
        %418 = vmatprep.subr.mxu0 0.0
        %419 = vmatpush1.msra.mxu0 0.0
        %420 = vmatprep.subr.mxu0 0.0
        %421 = vmatpush1.msra.mxu0 0.0
        %422 = vmatprep.subr.mxu0 0.0
        %423 = vmatpush1.msra.mxu0 0.0
        %424 = vmatprep.subr.mxu0 0.0
        %425 = vmatpush1.msra.mxu0 0.0
        %426 = vmatprep.subr.mxu0 0.0
        %427 = vmatpush1.msra.mxu0 0.0
        %428 = vmatprep.subr.mxu0 0.0
        %429 = vmatpush1.msra.mxu0 0.0
        %430 = vmatprep.mubr.f32.mxu0 0.0
        %431 = vmatmul.mubr.f32.gmra.mrb[0].mxu0 %v361
        %v432 = vpop.f32.mrb[0].mxu0
        %v433 = vadd.f32 0.0, %v432
        %v434 = vpop.f32.mrb[0].mxu0
        %435 = vmatprep.mubr.f32.mxu0 0.0
        %436 = vmatmul.mubr.f32.gmra.mrb[0].mxu0 %v364
        %v437 = vpop.f32.mrb[0].mxu0
        %v438 = vadd.f32 0.0, %v437
        %v439 = vpop.f32.mrb[0].mxu0
        %440 = vdwg.mxu0
        %v442 = vsel %vm359, %v283, 0
        %v445 = vsel %vm359, %v288, 0
        %447 = vmatprep.subr.mxu0 0.0
        %448 = vmatpush1.msra.mxu0 %v323
        %449 = vmatprep.subr.mxu0 0.0
        %450 = vmatpush1.msra.mxu0 %v324
        %451 = vmatprep.subr.mxu0 0.0
        %452 = vmatpush1.msra.mxu0 %v325
        %453 = vmatprep.subr.mxu0 0.0
        %454 = vmatpush1.msra.mxu0 %v326
        %455 = vmatprep.subr.mxu0 0.0
        %456 = vmatpush1.msra.mxu0 %v327
        %457 = vmatprep.subr.mxu0 0.0
        %458 = vmatpush1.msra.mxu0 %v328
        %459 = vmatprep.subr.mxu0 0.0
        %460 = vmatpush1.msra.mxu0 %v329
        %461 = vmatprep.subr.mxu0 0.0
        %462 = vmatpush1.msra.mxu0 %v330
        %463 = vmatprep.subr.mxu0 0.0
        %464 = vmatpush1.msra.mxu0 %v331
        %465 = vmatprep.subr.mxu0 0.0
        %466 = vmatpush1.msra.mxu0 %v332
        %467 = vmatprep.subr.mxu0 0.0
        %468 = vmatpush1.msra.mxu0 %v333
        %469 = vmatprep.subr.mxu0 0.0
        %470 = vmatpush1.msra.mxu0 %v334
        %471 = vmatprep.subr.mxu0 0.0
        %472 = vmatpush1.msra.mxu0 0.0
        %473 = vmatprep.subr.mxu0 0.0
        %474 = vmatpush1.msra.mxu0 0.0
        %475 = vmatprep.subr.mxu0 0.0
        %476 = vmatpush1.msra.mxu0 0.0
        %477 = vmatprep.subr.mxu0 0.0
        %478 = vmatpush1.msra.mxu0 0.0
        %479 = vmatprep.subr.mxu0 0.0
        %480 = vmatpush1.msra.mxu0 0.0
        %481 = vmatprep.subr.mxu0 0.0
        %482 = vmatpush1.msra.mxu0 0.0
        %483 = vmatprep.subr.mxu0 0.0
        %484 = vmatpush1.msra.mxu0 0.0
        %485 = vmatprep.subr.mxu0 0.0
        %486 = vmatpush1.msra.mxu0 0.0
        %487 = vmatprep.subr.mxu0 0.0
        %488 = vmatpush1.msra.mxu0 0.0
        %489 = vmatprep.subr.mxu0 0.0
        %490 = vmatpush1.msra.mxu0 0.0
        %491 = vmatprep.subr.mxu0 0.0
        %492 = vmatpush1.msra.mxu0 0.0
        %493 = vmatprep.subr.mxu0 0.0
        %494 = vmatpush1.msra.mxu0 0.0
        %495 = vmatprep.subr.mxu0 0.0
        %496 = vmatpush1.msra.mxu0 0.0
        %497 = vmatprep.subr.mxu0 0.0
        %498 = vmatpush1.msra.mxu0 0.0
        %499 = vmatprep.subr.mxu0 0.0
        %500 = vmatpush1.msra.mxu0 0.0
        %501 = vmatprep.subr.mxu0 0.0
        %502 = vmatpush1.msra.mxu0 0.0
        %503 = vmatprep.subr.mxu0 0.0
        %504 = vmatpush1.msra.mxu0 0.0
        %505 = vmatprep.subr.mxu0 0.0
        %506 = vmatpush1.msra.mxu0 0.0
        %507 = vmatprep.subr.mxu0 0.0
        %508 = vmatpush1.msra.mxu0 0.0
        %509 = vmatprep.subr.mxu0 0.0
        %510 = vmatpush1.msra.mxu0 0.0
        %511 = vmatprep.mubr.f32.mxu0 0.0
        %512 = vmatmul.mubr.f32.gmra.mrb[0].mxu0 %v442
        %v513 = vpop.f32.mrb[0].mxu0
        %v514 = vadd.f32 0.0, %v513
        %v515 = vpop.f32.mrb[0].mxu0
        %516 = vmatprep.mubr.f32.mxu0 0.0
        %517 = vmatmul.mubr.f32.gmra.mrb[0].mxu0 %v445
        %v518 = vpop.f32.mrb[0].mxu0
        %v519 = vadd.f32 0.0, %v518
        %v520 = vpop.f32.mrb[0].mxu0
        %521 = vdwg.mxu0
        %v523 = vsel %vm359, %v293, 0
        %v526 = vsel %vm359, %v298, 0
        %528 = vmatprep.subr.mxu0 0.0
        %529 = vmatpush1.msra.mxu0 %v335
        %530 = vmatprep.subr.mxu0 0.0
        %531 = vmatpush1.msra.mxu0 %v336
        %532 = vmatprep.subr.mxu0 0.0
        %533 = vmatpush1.msra.mxu0 %v337
        %534 = vmatprep.subr.mxu0 0.0
        %535 = vmatpush1.msra.mxu0 %v338
        %536 = vmatprep.subr.mxu0 0.0
        %537 = vmatpush1.msra.mxu0 %v339
        %538 = vmatprep.subr.mxu0 0.0
        %539 = vmatpush1.msra.mxu0 %v340
        %540 = vmatprep.subr.mxu0 0.0
        %541 = vmatpush1.msra.mxu0 %v341
        %542 = vmatprep.subr.mxu0 0.0
        %543 = vmatpush1.msra.mxu0 %v342
        %544 = vmatprep.subr.mxu0 0.0
        %545 = vmatpush1.msra.mxu0 %v343
        %546 = vmatprep.subr.mxu0 0.0
        %547 = vmatpush1.msra.mxu0 %v344
        %548 = vmatprep.subr.mxu0 0.0
        %549 = vmatpush1.msra.mxu0 %v345
        %550 = vmatprep.subr.mxu0 0.0
        %551 = vmatpush1.msra.mxu0 %v346
        %552 = vmatprep.subr.mxu0 0.0
        %553 = vmatpush1.msra.mxu0 0.0
        %554 = vmatprep.subr.mxu0 0.0
        %555 = vmatpush1.msra.mxu0 0.0
        %556 = vmatprep.subr.mxu0 0.0
        %557 = vmatpush1.msra.mxu0 0.0
        %558 = vmatprep.subr.mxu0 0.0
        %559 = vmatpush1.msra.mxu0 0.0
        %560 = vmatprep.subr.mxu0 0.0
        %561 = vmatpush1.msra.mxu0 0.0
        %562 = vmatprep.subr.mxu0 0.0
        %563 = vmatpush1.msra.mxu0 0.0
        %564 = vmatprep.subr.mxu0 0.0
        %565 = vmatpush1.msra.mxu0 0.0
        %566 = vmatprep.subr.mxu0 0.0
        %567 = vmatpush1.msra.mxu0 0.0
        %568 = vmatprep.subr.mxu0 0.0
        %569 = vmatpush1.msra.mxu0 0.0
        %570 = vmatprep.subr.mxu0 0.0
        %571 = vmatpush1.msra.mxu0 0.0
        %572 = vmatprep.subr.mxu0 0.0
        %573 = vmatpush1.msra.mxu0 0.0
        %574 = vmatprep.subr.mxu0 0.0
        %575 = vmatpush1.msra.mxu0 0.0
        %576 = vmatprep.subr.mxu0 0.0
        %577 = vmatpush1.msra.mxu0 0.0
        %578 = vmatprep.subr.mxu0 0.0
        %579 = vmatpush1.msra.mxu0 0.0
        %580 = vmatprep.subr.mxu0 0.0
        %581 = vmatpush1.msra.mxu0 0.0
        %582 = vmatprep.subr.mxu0 0.0
        %583 = vmatpush1.msra.mxu0 0.0
        %584 = vmatprep.subr.mxu0 0.0
        %585 = vmatpush1.msra.mxu0 0.0
        %586 = vmatprep.subr.mxu0 0.0
        %587 = vmatpush1.msra.mxu0 0.0
        %588 = vmatprep.subr.mxu0 0.0
        %589 = vmatpush1.msra.mxu0 0.0
        %590 = vmatprep.subr.mxu0 0.0
        %591 = vmatpush1.msra.mxu0 0.0
        %592 = vmatprep.mubr.f32.mxu0 0.0
        %593 = vmatmul.mubr.f32.gmra.mrb[0].mxu0 %v523
        %v594 = vpop.f32.mrb[0].mxu0
        %v595 = vadd.f32 0.0, %v594
        %v596 = vpop.f32.mrb[0].mxu0
        %597 = vmatprep.mubr.f32.mxu0 0.0
        %598 = vmatmul.mubr.f32.gmra.mrb[0].mxu0 %v526
        %v599 = vpop.f32.mrb[0].mxu0
        %v600 = vadd.f32 0.0, %v599
        %v601 = vpop.f32.mrb[0].mxu0
        %602 = vdwg.mxu0
        %v604 = vsel %vm359, %v303, 0
        %v607 = vsel %vm359, %v308, 0
        %609 = vmatprep.subr.mxu0 0.0
        %610 = vmatpush1.msra.mxu0 %v347
        %611 = vmatprep.subr.mxu0 0.0
        %612 = vmatpush1.msra.mxu0 %v348
        %613 = vmatprep.subr.mxu0 0.0
        %614 = vmatpush1.msra.mxu0 %v349
        %615 = vmatprep.subr.mxu0 0.0
        %616 = vmatpush1.msra.mxu0 %v350
        %617 = vmatprep.subr.mxu0 0.0
        %618 = vmatpush1.msra.mxu0 %v351
        %619 = vmatprep.subr.mxu0 0.0
        %620 = vmatpush1.msra.mxu0 %v352
        %621 = vmatprep.subr.mxu0 0.0
        %622 = vmatpush1.msra.mxu0 %v353
        %623 = vmatprep.subr.mxu0 0.0
        %624 = vmatpush1.msra.mxu0 %v354
        %625 = vmatprep.subr.mxu0 0.0
        %626 = vmatpush1.msra.mxu0 %v355
        %627 = vmatprep.subr.mxu0 0.0
        %628 = vmatpush1.msra.mxu0 %v356
        %629 = vmatprep.subr.mxu0 0.0
        %630 = vmatpush1.msra.mxu0 %v357
        %631 = vmatprep.subr.mxu0 0.0
        %632 = vmatpush1.msra.mxu0 %v358
        %633 = vmatprep.subr.mxu0 0.0
        %634 = vmatpush1.msra.mxu0 0.0
        %635 = vmatprep.subr.mxu0 0.0
        %636 = vmatpush1.msra.mxu0 0.0
        %637 = vmatprep.subr.mxu0 0.0
        %638 = vmatpush1.msra.mxu0 0.0
        %639 = vmatprep.subr.mxu0 0.0
        %640 = vmatpush1.msra.mxu0 0.0
        %641 = vmatprep.subr.mxu0 0.0
        %642 = vmatpush1.msra.mxu0 0.0
        %643 = vmatprep.subr.mxu0 0.0
        %644 = vmatpush1.msra.mxu0 0.0
        %645 = vmatprep.subr.mxu0 0.0
        %646 = vmatpush1.msra.mxu0 0.0
        %647 = vmatprep.subr.mxu0 0.0
        %648 = vmatpush1.msra.mxu0 0.0
        %649 = vmatprep.subr.mxu0 0.0
        %650 = vmatpush1.msra.mxu0 0.0
        %651 = vmatprep.subr.mxu0 0.0
        %652 = vmatpush1.msra.mxu0 0.0
        %653 = vmatprep.subr.mxu0 0.0
        %654 = vmatpush1.msra.mxu0 0.0
        %655 = vmatprep.subr.mxu0 0.0
        %656 = vmatpush1.msra.mxu0 0.0
        %657 = vmatprep.subr.mxu0 0.0
        %658 = vmatpush1.msra.mxu0 0.0
        %659 = vmatprep.subr.mxu0 0.0
        %660 = vmatpush1.msra.mxu0 0.0
        %661 = vmatprep.subr.mxu0 0.0
        %662 = vmatpush1.msra.mxu0 0.0
        %663 = vmatprep.subr.mxu0 0.0
        %664 = vmatpush1.msra.mxu0 0.0
        %665 = vmatprep.subr.mxu0 0.0
        %666 = vmatpush1.msra.mxu0 0.0
        %667 = vmatprep.subr.mxu0 0.0
        %668 = vmatpush1.msra.mxu0 0.0
        %669 = vmatprep.subr.mxu0 0.0
        %670 = vmatpush1.msra.mxu0 0.0
        %671 = vmatprep.subr.mxu0 0.0
        %672 = vmatpush1.msra.mxu0 0.0
        %673 = vmatprep.mubr.f32.mxu0 0.0
        %674 = vmatmul.mubr.f32.gmra.mrb[0].mxu0 %v604
        %v675 = vpop.f32.mrb[0].mxu0
        %v676 = vadd.f32 0.0, %v675
        %v677 = vpop.f32.mrb[0].mxu0
        %678 = vmatprep.mubr.f32.mxu0 0.0
        %679 = vmatmul.mubr.f32.gmra.mrb[0].mxu0 %v607
        %v680 = vpop.f32.mrb[0].mxu0
        %v681 = vadd.f32 0.0, %v680
        %v682 = vpop.f32.mrb[0].mxu0
        %683 = vdwg.mxu0
        %v684 = vmax.f32 %v433, 0.0
        %v685 = vmax.f32 %v438, 0.0
        %v686 = vmax.f32 %v514, 0.0
        %v687 = vmax.f32 %v519, 0.0
        %v688 = vmax.f32 %v595, 0.0
        %v689 = vmax.f32 %v600, 0.0
        %v690 = vmax.f32 %v676, 0.0
        %v691 = vmax.f32 %v681, 0.0
        %v692 = vmin.f32 %v684, 1.0
        %v693 = vmin.f32 %v685, 1.0
        %v694 = vmin.f32 %v686, 1.0
        %v695 = vmin.f32 %v687, 1.0
        %v696 = vmin.f32 %v688, 1.0
        %v697 = vmin.f32 %v689, 1.0
        %v698 = vmin.f32 %v690, 1.0
        %v699 = vmin.f32 %v691, 1.0
        %vm700 = vcmask 392192
        %701 = vst.msk [vmem:[%s163] sm:$0xff] %vm700, %v692
        %702 = vst.msk [vmem:[%s163 + $0x8] sm:$0xff] %vm700, %v693
        %703 = vst.msk [vmem:[%s163 + $0x10] sm:$0xff] %vm700, %v694
        %704 = vst.msk [vmem:[%s163 + $0x18] sm:$0xff] %vm700, %v695
        %705 = vst.msk [vmem:[%s163 + $0x20] sm:$0xff] %vm700, %v696
        %706 = vst.msk [vmem:[%s163 + $0x28] sm:$0xff] %vm700, %v697
        %707 = vst.msk [vmem:[%s163 + $0x30] sm:$0xff] %vm700, %v698
        %708 = vst.msk [vmem:[%s163 + $0x38] sm:$0xff] %vm700, %v699
        %s709 = sand.u32 %s93, 1
        %s710 = scalar_lea.sflag [#allocation3], %s709
        %s711 = sand.u32 %s93, 1
        %s712 = smul.addr %s711, 64
        %s713 = scalar_lea.vmem [#allocation2], %s712
        // Predicated region
        $region33: #{tpu_custom_call.1} parent=31 // pred_check
          %p714 = pneg %p103
        $region34: #{tpu_custom_call.1} parent=31 // pred_check_branch
          %716 = sbr.rel (%p714) target = $region36
        $region35: #{tpu_custom_call.1} parent=31 // pred_region
          %s718 = ssub.s32 1024, 1024
          %719 = vsyncadd %s710, %s718
          %s720 = smul.addr %s17, 8
          %s721 = smul.addr %s720, 128
          %s722 = scalar_lea.hbm %s3, %s721
          %s723 = sshll.u32 %s713, 4
          %s724 = int_to_ptr.vmem [resolvable:$true] %s723
          %729 = dma.vmem_to_hbm [thread:$0]  %s724, 1024, %s722, %s710, 128, 128, 8
        $region36: #{tpu_custom_call.1} parent=31 // pred_fallthru
          _
      $region32: #{tpu_custom_call.1} parent=5 // pred_fallthru
        _
      %p730 = scmp.le.s32.totalorder 2, %s12
      // Predicated region
      $region37: #{tpu_custom_call.1} parent=5 // pred_check
        %p731 = pneg %p730
      $region38: #{tpu_custom_call.1} parent=5 // pred_check_branch
        %733 = sbr.rel (%p731) target = $region40
      $region39: #{tpu_custom_call.1} parent=5 // pred_region
        %s734 = ssub.s32 %s12, 2
        // Predicated region
        $region41: #{tpu_custom_call.1} parent=39 // pred_check
          %p735 = pneg %p109
        $region42: #{tpu_custom_call.1} parent=39 // pred_check_branch
          %737 = sbr.rel (%p735) target = $region44
        $region43: #{tpu_custom_call.1} parent=39 // pred_region
          %s738 = sand.u32 %s94, 1
          %s739 = scalar_lea.sflag [#allocation3], %s738
          %s740 = sand.u32 %s94, 1
          %s741 = smul.addr %s740, 64
          %s742 = scalar_lea.vmem [#allocation2], %s741
          %743 = dma.done %s739, 1024
        $region44: #{tpu_custom_call.1} parent=39 // pred_fallthru
          _
      $region40: #{tpu_custom_call.1} parent=5 // pred_fallthru
        _
    $region6: #{tpu_custom_call.1} parent=1 // loop_footer
      %s16 = sadd.s32 1, %s12
    $region7: #{tpu_custom_call.1} parent=1 // loop_footer_branch
      %11 = sbr.rel target = $region3
    $region8: #{tpu_custom_call.1} parent=1 // loop_exit
      _
    %744 = vsyncpa [#allocation3], 1
    %s745 = scalar_lea.sflag [#allocation3], 1
    %746 = vsyncpa %s745, 1

</llo_original>
